<compile_context>
chip_gen: v5e
topology: v5e:2x2
jax: 0.10.0
libtpu: 0.0.40
codegen_flags: <defaults>
</compile_context>

<pallas_src>
import jax
import jax.numpy as jnp
import numpy as np
from jax import lax
from jax.experimental import pallas as pl
from jax.experimental.pallas import tpu as pltpu


def _mlp_sigmoid(m, w1t, w2):
    """sigmoid(fc2(relu(fc1(m)))) for the 1x1-conv MLP, kept off the MXU.

    m:   (C, 1)    f32 per-channel spatial max
    w1t: (C, Chid) fc1 weight, pre-transposed (no in-kernel transpose needed)
    w2:  (C, Chid) fc2 weight
    returns (C, 1) f32 attention scale
    """
    h = jnp.sum(w1t.astype(jnp.float32) * m, axis=0, keepdims=True)     # (1, Chid)
    h = jnp.maximum(h, 0.0)                                             # ReLU
    s = jnp.sum(w2.astype(jnp.float32) * h, axis=-1, keepdims=True)     # (C, 1)
    return jax.nn.sigmoid(s)                                            # EUP exp/recip


def _fused_kernel(x_ref, w1t_ref, w2_ref, o_ref):
    """Whole sample resident in VMEM: max -> MLP -> scale * x. One read, one write."""
    xf = x_ref[0].astype(jnp.float32)                       # (C, HW), lane-dense
    m = jnp.max(xf, axis=-1, keepdims=True)                 # (C, 1)
    s = _mlp_sigmoid(m, w1t_ref[...], w2_ref[...])          # (C, 1)
    o_ref[0] = (xf * s).astype(o_ref.dtype)


def _make_scale_kernel(C, HW, thw, chunked, needs_mask):
    """Tiled running spatial max + MLP epilogue (two-pass fallback, Kernel A)."""

    def kernel(x_ref, w1t_ref, w2_ref, scale_ref, max_sc):
        t = pl.program_id(1)

        @pl.when(t == 0)
        def _():
            max_sc[...] = jnp.full(max_sc.shape, -jnp.inf, dtype=max_sc.dtype)

        xt = x_ref[0].astype(jnp.float32)                   # (C, thw)
        if needs_mask:
            # cdiv grid: mask the out-of-range lanes of the last partial tile.
            lane = lax.broadcasted_iota(jnp.int32, (C, thw), 1) + t * thw
            xt = jnp.where(lane < HW, xt, -jnp.inf)
        if chunked:
            # Elementwise (VALU) running max into a (C, 128) accumulator; the single
            # cross-lane reduce (XLU) only happens in the epilogue below.
            cur = max_sc[...]
            for i in range(thw // 128):
                cur = jnp.maximum(cur, xt[:, i * 128:(i + 1) * 128])
            max_sc[...] = cur
        else:
            max_sc[...] = jnp.maximum(max_sc[...],
                                      jnp.max(xt, axis=-1, keepdims=True))

        @pl.when(t == pl.num_programs(1) - 1)
        def _():
            m = jnp.max(max_sc[...], axis=-1, keepdims=True)            # (C, 1)
            scale_ref[0] = _mlp_sigmoid(m, w1t_ref[...], w2_ref[...]).astype(
                scale_ref.dtype)

    return kernel


def _apply_scale_kernel(x_ref, scale_ref, o_ref):
    """o = scale * x (f32 multiply, cast once), lane-dense spatial tile (Kernel B)."""
    o_ref[...] = (x_ref[...].astype(jnp.float32) * scale_ref[...]).astype(o_ref.dtype)


def _pick_hw_tile(hw, c, itemsize, budget_bytes=4 << 20):
    """Largest 128-multiple lane tile under a per-operand VMEM budget (no divisor
    search — the grid uses cdiv + masking)."""
    if hw <= 128:
        return int(hw)
    cap = max(128, (budget_bytes // max(c * itemsize, 1)) // 128 * 128)
    return int(min(cap, (hw // 128) * 128))


def channel_attention(x_nchw, fc1_weight, fc2_weight, *, hw_tile=None,
                      force_two_pass=False, donate_x=False):
    """Equivalent of ChannelAttention.forward.

    x_nchw:     (N, C, H, W)
    fc1_weight: (C // 16, C, 1, 1)   PyTorch Conv2d weight, bias=False
    fc2_weight: (C, C // 16, 1, 1)   PyTorch Conv2d weight, bias=False
    returns     (N, C, H, W)
    """
    N, C, H, W = x_nchw.shape
    Chid = fc1_weight.shape[0]
    HW = H * W
    itemsize = jnp.dtype(x_nchw.dtype).itemsize

    # Free, contiguous reshape: spatial axis becomes the lane axis.
    x = x_nchw.reshape(N, C, HW)
    w1t = fc1_weight.reshape(Chid, C).T            # (C, Chid)  pre-transposed fc1
    w2 = fc2_weight.reshape(C, Chid)               # (C, Chid)
    io_alias = {0: 0} if donate_x else {}

    # -------- fused single-pass path (read x once, write once) --------
    slab = C * HW * itemsize                       # one (C, HW) sample slab
    # 2x double-buffered (in + out) + an f32 working copy + slack.
    fused_need = 4 * slab + 2 * C * HW * 4 + (1 << 20)
    use_fused = (hw_tile is None) and (not force_two_pass) and fused_need <= (30 << 20)

    if use_fused:
        vmem_limit = int(min(max(fused_need + (4 << 20), 24 << 20), 48 << 20))
        out = pl.pallas_call(
            _fused_kernel,
            out_shape=jax.ShapeDtypeStruct((N, C, HW), x_nchw.dtype),
            grid_spec=pltpu.PrefetchScalarGridSpec(
                num_scalar_prefetch=0,
                grid=(N,),
                in_specs=[
                    pl.BlockSpec((1, C, HW), lambda n: (n, 0, 0)),
                    pl.BlockSpec((C, Chid), lambda n: (0, 0)),
                    pl.BlockSpec((C, Chid), lambda n: (0, 0)),
                ],
                out_specs=pl.BlockSpec((1, C, HW), lambda n: (n, 0, 0)),
            ),
            compiler_params=pltpu.CompilerParams(
                dimension_semantics=("parallel",),
                vmem_limit_bytes=vmem_limit),
            input_output_aliases=io_alias,
        )(x, w1t, w2)
        return out.reshape(N, C, H, W)

    # -------- two-pass fallback: slab too large for VMEM (or explicitly forced) --------
    thw = _pick_hw_tile(HW, C, itemsize) if hw_tile is None else int(hw_tile)
    assert thw == HW or (thw % 128 == 0 and thw <= HW), \
        "hw_tile must equal H*W or be a multiple of 128 that is <= H*W"
    T = pl.cdiv(HW, thw)
    needs_mask = (HW % thw) != 0
    chunked = (thw % 128 == 0) and (thw // 128) <= 64
    tile_bytes = C * thw * itemsize
    vmem_limit = int(min(max(4 * tile_bytes + (8 << 20), 24 << 20), 48 << 20))

    # Kernel A: per-(n, c) running spatial max + MLP + sigmoid -> scale (N, C, 1).
    scale = pl.pallas_call(
        _make_scale_kernel(C, HW, thw, chunked, needs_mask),
        out_shape=jax.ShapeDtypeStruct((N, C, 1), jnp.float32),
        grid_spec=pltpu.PrefetchScalarGridSpec(
            num_scalar_prefetch=0,
            grid=(N, T),
            in_specs=[
                pl.BlockSpec((1, C, thw), lambda n, t: (n, 0, t)),
                pl.BlockSpec((C, Chid), lambda n, t: (0, 0)),
                pl.BlockSpec((C, Chid), lambda n, t: (0, 0)),
            ],
            out_specs=pl.BlockSpec((1, C, 1), lambda n, t: (n, 0, 0)),
            scratch_shapes=[
                pltpu.VMEM((C, 128) if chunked else (C, 1), jnp.float32)],
        ),
        compiler_params=pltpu.CompilerParams(
            dimension_semantics=("parallel", "arbitrary"),
            vmem_limit_bytes=vmem_limit),
    )(x, w1t, w2)

    # Kernel B: lane-dense tiled broadcast multiply.
    out = pl.pallas_call(
        _apply_scale_kernel,
        out_shape=jax.ShapeDtypeStruct((N, C, HW), x_nchw.dtype),
        grid_spec=pltpu.PrefetchScalarGridSpec(
            num_scalar_prefetch=0,
            grid=(N, T),
            in_specs=[
                pl.BlockSpec((1, C, thw), lambda n, t: (n, 0, t)),
                pl.BlockSpec((1, C, 1), lambda n, t: (n, 0, 0)),
            ],
            out_specs=pl.BlockSpec((1, C, thw), lambda n, t: (n, 0, t)),
        ),
        compiler_params=pltpu.CompilerParams(
            dimension_semantics=("parallel", "parallel"),
            vmem_limit_bytes=vmem_limit),
        input_output_aliases=io_alias,
    )(x, scale)

    return out.reshape(N, C, H, W)


def _reference(x, fc1_weight, fc2_weight):
    """Pure-JAX reference for ChannelAttention.forward."""
    m = jnp.max(x, axis=(2, 3))                                # AdaptiveMaxPool2d(1)
    w1 = fc1_weight.reshape(fc1_weight.shape[0], -1)           # (Chid, C)
    w2 = fc2_weight.reshape(fc2_weight.shape[0], -1)           # (C, Chid)
    h = jnp.maximum(m @ w1.T, 0.0)                             # fc1 + ReLU
    s = jax.nn.sigmoid(h @ w2.T)                               # fc2 + Sigmoid
    return s[:, :, None, None] * x


if __name__ == "__main__":
    # ChannelAttention(in_planes=32): hidden = in_planes // 16 = 2.
    N, C, H, W = 2, 32, 16, 16
    Chid = C // 16

    key = jax.random.PRNGKey(0)
    kx, k1, k2, kx2 = jax.random.split(key, 4)
    x = jax.random.normal(kx, (N, C, H, W), dtype=jnp.float32)
    fc1_w = jax.random.normal(k1, (Chid, C, 1, 1), dtype=jnp.float32) * 0.2
    fc2_w = jax.random.normal(k2, (C, Chid, 1, 1), dtype=jnp.float32) * 0.2

    ref = _reference(x, fc1_w, fc2_w)

    # 1) Default: fused single-pass path (slab fits VMEM at this shape).
    out = channel_attention(x, fc1_w, fc2_w)
    out = jax.block_until_ready(out)
    np.testing.assert_allclose(np.asarray(out), np.asarray(ref), rtol=1e-5, atol=1e-5)

    # 2) Force the two-pass tiled path (exact tiling, T > 1, running-max accumulator).
    out2 = channel_attention(x, fc1_w, fc2_w, force_two_pass=True, hw_tile=128)
    out2 = jax.block_until_ready(out2)
    np.testing.assert_allclose(np.asarray(out2), np.asarray(ref), rtol=1e-5, atol=1e-5)

    # 3) Partial last tile: H*W = 400 is not a multiple of 128 -> exercises the
    #    cdiv grid + -inf lane masking in the running max.
    x2 = jax.random.normal(kx2, (N, C, 20, 20), dtype=jnp.float32)
    ref2 = _reference(x2, fc1_w, fc2_w)
    out3 = channel_attention(x2, fc1_w, fc2_w, force_two_pass=True, hw_tile=128)
    out3 = jax.block_until_ready(out3)
    np.testing.assert_allclose(np.asarray(out3), np.asarray(ref2), rtol=1e-5, atol=1e-5)

    print("KERNEL_OK")
</pallas_src>

<mosaic_0001>
module attributes {stable_mosaic.version = 11 : i64} {
  func.func @_fused_kernel(%arg0: i32, %arg1: memref<1x32x256xf32, #tpu.memory_space<vmem>>, %arg2: memref<32x2xf32, #tpu.memory_space<vmem>>, %arg3: memref<32x2xf32, #tpu.memory_space<vmem>>, %arg4: memref<1x32x256xf32, #tpu.memory_space<vmem>>) attributes {dimension_semantics = [#tpu.dimension_semantics<parallel>], iteration_bounds = array<i64: 2>, scalar_prefetch = 0 : i64, scratch_operands = 0 : i64, tpu.core_type = #tpu.core_type<tc>, window_params = [{transform_indices = @transform_0, window_bounds = array<i64: 1, 32, 256>}, {pipeline_mode = #tpu.pipeline_mode<synchronous>, transform_indices = @transform_1, window_bounds = array<i64: 32, 2>}, {pipeline_mode = #tpu.pipeline_mode<synchronous>, transform_indices = @transform_2, window_bounds = array<i64: 32, 2>}, {transform_indices = @transform_3, window_bounds = array<i64: 1, 32, 256>}]} {
    %c0 = arith.constant 0 : index
    %c0_0 = arith.constant 0 : index
    %c0_1 = arith.constant 0 : index
    %0 = vector.load %arg1[%c0, %c0_0, %c0_1] : memref<1x32x256xf32, #tpu.memory_space<vmem>>, vector<1x32x256xf32>
    %1 = vector.shape_cast %0 : vector<1x32x256xf32> to vector<32x256xf32>
    %cst = arith.constant dense<0xFF800000> : vector<32xf32>
    %2 = vector.multi_reduction <maximumf>, %1, %cst [1] : vector<32x256xf32> to vector<32xf32>
    %3 = vector.shape_cast %2 : vector<32xf32> to vector<32x1xf32>
    %c0_2 = arith.constant 0 : index
    %c0_3 = arith.constant 0 : index
    %4 = vector.load %arg2[%c0_2, %c0_3] : memref<32x2xf32, #tpu.memory_space<vmem>>, vector<32x2xf32>
    %c0_4 = arith.constant 0 : index
    %c0_5 = arith.constant 0 : index
    %5 = vector.load %arg3[%c0_4, %c0_5] : memref<32x2xf32, #tpu.memory_space<vmem>>, vector<32x2xf32>
    %6 = vector.broadcast %3 : vector<32x1xf32> to vector<32x2xf32>
    %7 = arith.mulf %4, %6 : vector<32x2xf32>
    %cst_6 = arith.constant dense<0.000000e+00> : vector<2xf32>
    %8 = vector.multi_reduction <add>, %7, %cst_6 [0] : vector<32x2xf32> to vector<2xf32>
    %9 = vector.shape_cast %8 : vector<2xf32> to vector<1x2xf32>
    %cst_7 = arith.constant 0.000000e+00 : f32
    %10 = vector.broadcast %cst_7 : f32 to vector<1x2xf32>
    %11 = arith.maximumf %9, %10 : vector<1x2xf32>
    %12 = vector.broadcast %11 : vector<1x2xf32> to vector<32x2xf32>
    %13 = arith.mulf %5, %12 : vector<32x2xf32>
    %cst_8 = arith.constant dense<0.000000e+00> : vector<32xf32>
    %14 = vector.multi_reduction <add>, %13, %cst_8 [1] : vector<32x2xf32> to vector<32xf32>
    %15 = vector.shape_cast %14 : vector<32xf32> to vector<32x1xf32>
    %16 = arith.negf %15 : vector<32x1xf32>
    %17 = math.exp %16 : vector<32x1xf32>
    %cst_9 = arith.constant 1.000000e+00 : f32
    %18 = vector.broadcast %cst_9 : f32 to vector<32x1xf32>
    %19 = arith.addf %18, %17 : vector<32x1xf32>
    %20 = arith.divf %18, %19 : vector<32x1xf32>
    %21 = vector.broadcast %20 : vector<32x1xf32> to vector<32x256xf32>
    %22 = arith.mulf %1, %21 : vector<32x256xf32>
    %c0_10 = arith.constant 0 : index
    %c0_11 = arith.constant 0 : index
    %c0_12 = arith.constant 0 : index
    %23 = vector.load %arg4[%c0_10, %c0_11, %c0_12] : memref<1x32x256xf32, #tpu.memory_space<vmem>>, vector<1x32x256xf32>
    %24 = vector.shape_cast %23 : vector<1x32x256xf32> to vector<32x256xf32>
    %25 = vector.shape_cast %22 : vector<32x256xf32> to vector<1x32x256xf32>
    tpu.vector_store %arg4[%c0_10, %c0_11, %c0_12], %25 {strides = array<i32>} : memref<1x32x256xf32, #tpu.memory_space<vmem>>, vector<1x32x256xf32>,
    return
  }
  func.func @transform_0(%arg0: i32) -> (i32, i32, i32) {
    %c0_i32 = arith.constant 0 : i32
    %c0_i32_0 = arith.constant 0 : i32
    %c0_i32_1 = arith.constant 0 : i32
    return %arg0, %c0_i32, %c0_i32_0 : i32, i32, i32
  }
  func.func @transform_1(%arg0: i32) -> (i32, i32) {
    %c0_i32 = arith.constant 0 : i32
    %c0_i32_0 = arith.constant 0 : i32
    %c0_i32_1 = arith.constant 0 : i32
    return %c0_i32, %c0_i32_0 : i32, i32
  }
  func.func @transform_2(%arg0: i32) -> (i32, i32) {
    %c0_i32 = arith.constant 0 : i32
    %c0_i32_0 = arith.constant 0 : i32
    %c0_i32_1 = arith.constant 0 : i32
    return %c0_i32, %c0_i32_0 : i32, i32
  }
  func.func @transform_3(%arg0: i32) -> (i32, i32, i32) {
    %c0_i32 = arith.constant 0 : i32
    %c0_i32_0 = arith.constant 0 : i32
    %c0_i32_1 = arith.constant 0 : i32
    return %arg0, %c0_i32, %c0_i32_0 : i32, i32, i32
  }
}

</mosaic_0001>

<llo_original>
// kernel: tpu_custom_call.1
$region0: #{tpu_custom_call.1}
  #allocation0 [shape = 'u32[]', space=smem, size = 0x4, offset = 0x4, fixed_abs, tag = 'smem constant byte address 0x4 - core index']
  #allocation1 [shape = 'u32[72,128]{1,0:T(1,128)}', space=vmem, size = 0x9000, scoped, tag = 'internal scratch']
  %s0 = inlined_call_operand.hbm [shape: f32[2,32,256], index: 0, kind: input, shape index: {}]
  %s1 = inlined_call_operand.vmem [shape: f32[32,2], index: 1, kind: input, shape index: {}]
  %s2 = inlined_call_operand.vmem [shape: f32[32,2], index: 2, kind: input, shape index: {}]
  %s3 = inlined_call_operand.hbm [shape: f32[2,32,256], index: 3, kind: output, shape index: {}]
  %s4 = sld [smem:[#allocation0]]
  $region49: #{tpu_custom_call.1} parent=0
    _
  %s6 = ssub.s32 1, %s4
  %s7 = scalar_select 0, %s6, %s4
  $region1: #{tpu_custom_call.1} parent=0
    #allocation2 [shape = 'u8[65536]{0}', space=vmem, size = 0x10000, scoped, tag = 'input window, operand 0']
    #allocation3 [shape = 's32[2]{0}', space=sflag, size = 0x8, scoped, tag = 'scoped memory for tpu_custom_call.1']
    #allocation4 [shape = 's32[2]{0}', space=sflag, size = 0x8, scoped, tag = 'scoped memory for tpu_custom_call.1']
    #allocation5 [shape = 'u8[65536]{0}', space=vmem, size = 0x10000, scoped, tag = 'output window, operand 0']
    %8 = vsyncpa [#allocation3], 0
    %s9 = scalar_lea.sflag [#allocation3], 1
    %10 = vsyncpa %s9, 0
    %11 = vsyncpa [#allocation4], 0
    %s12 = scalar_lea.sflag [#allocation4], 1
    %13 = vsyncpa %s12, 0
    loop: start=0, step=1, limit=4
    $region2: #{tpu_custom_call.1} parent=1 // loop_pre_header
      _
    $region3: #{tpu_custom_call.1} parent=1 // loop_header
      %s15 = sphi 0, %s19
      %p16 = scmp.ge.s32.totalorder %s15, 4
      %s25 = sphi 0, %s27
      %s28 = sphi 0, %s25
      %s29 = sphi 0, %s28
      %s45 = sphi 0, %s29
      %s49 = sphi 0, %s49
      %s51 = sphi 0, %s49
      %s52 = sphi 0, %s51
      %s66 = sphi 0, %s52
      %s70 = sphi 0, %s70
      %s72 = sphi 0, %s70
      %s73 = sphi 0, %s72
      %s87 = sphi 0, %s73
      %s93 = sphi 0, %s95
      %s96 = sphi 0, %s93
      %s97 = sphi 0, %s96
      %s113 = sphi 0, %s97
    $region4: #{tpu_custom_call.1} parent=1 // loop_header_branch
      %18 = sbr.rel (%p16) target = $region8
    $region5: #{tpu_custom_call.1} parent=1 // loop_body
      %s20 = ssub.s32 %s15, 1
      %s21 = ssub.s32 %s15, 2
      %s22 = sadd.s32 %s15, 1
      %s23 = ssub.s32 %s15, %s22
      %p24 = scmp.eq.s32.totalorder %s23, 0
      %s26 = sadd.s32 %s25, 1
      %s27 = scalar_select %p24, %s25, %s26
      %p30 = pneg %p24
      %p31 = scmp.eq.s32.totalorder %s15, 1
      %p32 = por %p30, %p31
      %p33 = scmp.ne.s32.totalorder %s25, %s28
      %p34 = scmp.eq.s32.totalorder %s15, 0
      %p35 = por %p33, %p34
      %p36 = scmp.ne.s32.totalorder %s25, %s28
      %p37 = scmp.eq.s32.totalorder %s20, 1
      %p38 = por %p36, %p37
      %p39 = scmp.ne.s32.totalorder %s28, %s29
      %p40 = scmp.eq.s32.totalorder %s20, 0
      %p41 = por %p39, %p40
      %p42 = scmp.ne.s32.totalorder %s28, %s29
      %p43 = scmp.eq.s32.totalorder %s21, 1
      %p44 = por %p42, %p43
      %p46 = scmp.ne.s32.totalorder %s29, %s45
      %p47 = scmp.eq.s32.totalorder %s21, 0
      %p48 = por %p46, %p47
      %s50 = sadd.s32 %s49, 1
      %p53 = scmp.eq.s32.totalorder %s15, 1
      %p54 = scmp.ne.s32.totalorder %s49, %s51
      %p55 = scmp.eq.s32.totalorder %s15, 0
      %p56 = por %p54, %p55
      %p57 = scmp.ne.s32.totalorder %s49, %s51
      %p58 = scmp.eq.s32.totalorder %s20, 1
      %p59 = por %p57, %p58
      %p60 = scmp.ne.s32.totalorder %s51, %s52
      %p61 = scmp.eq.s32.totalorder %s20, 0
      %p62 = por %p60, %p61
      %p63 = scmp.ne.s32.totalorder %s51, %s52
      %p64 = scmp.eq.s32.totalorder %s21, 1
      %p65 = por %p63, %p64
      %p67 = scmp.ne.s32.totalorder %s52, %s66
      %p68 = scmp.eq.s32.totalorder %s21, 0
      %p69 = por %p67, %p68
      %s71 = sadd.s32 %s70, 1
      %p74 = scmp.eq.s32.totalorder %s15, 1
      %p75 = scmp.ne.s32.totalorder %s70, %s72
      %p76 = scmp.eq.s32.totalorder %s15, 0
      %p77 = por %p75, %p76
      %p78 = scmp.ne.s32.totalorder %s70, %s72
      %p79 = scmp.eq.s32.totalorder %s20, 1
      %p80 = por %p78, %p79
      %p81 = scmp.ne.s32.totalorder %s72, %s73
      %p82 = scmp.eq.s32.totalorder %s20, 0
      %p83 = por %p81, %p82
      %p84 = scmp.ne.s32.totalorder %s72, %s73
      %p85 = scmp.eq.s32.totalorder %s21, 1
      %p86 = por %p84, %p85
      %p88 = scmp.ne.s32.totalorder %s73, %s87
      %p89 = scmp.eq.s32.totalorder %s21, 0
      %p90 = por %p88, %p89
      %s91 = ssub.s32 %s15, %s22
      %p92 = scmp.eq.s32.totalorder %s91, 0
      %s94 = sadd.s32 %s93, 1
      %s95 = scalar_select %p92, %s93, %s94
      %p98 = pneg %p92
      %p99 = scmp.eq.s32.totalorder %s15, 1
      %p100 = por %p98, %p99
      %p101 = scmp.ne.s32.totalorder %s93, %s96
      %p102 = scmp.eq.s32.totalorder %s15, 0
      %p103 = por %p101, %p102
      %p104 = scmp.ne.s32.totalorder %s93, %s96
      %p105 = scmp.eq.s32.totalorder %s20, 1
      %p106 = por %p104, %p105
      %p107 = scmp.ne.s32.totalorder %s96, %s97
      %p108 = scmp.eq.s32.totalorder %s20, 0
      %p109 = por %p107, %p108
      %p110 = scmp.ne.s32.totalorder %s96, %s97
      %p111 = scmp.eq.s32.totalorder %s21, 1
      %p112 = por %p110, %p111
      %p114 = scmp.ne.s32.totalorder %s97, %s113
      %p115 = scmp.eq.s32.totalorder %s21, 0
      %p116 = por %p114, %p115
      %p117 = scmp.le.s32.totalorder 1, %s15
      %p118 = scmp.lt.s32.totalorder %s15, 3
      %p119 = pnand %p117, %p118
      %p120 = pneg %p119
      // Predicated region
      $region9: #{tpu_custom_call.1} parent=5 // pred_check
        _
      $region10: #{tpu_custom_call.1} parent=5 // pred_check_branch
        %122 = sbr.rel (%p119) target = $region12
      $region11: #{tpu_custom_call.1} parent=5 // pred_region
        %s123 = ssub.s32 %s15, 1
        // Predicated region
        $region13: #{tpu_custom_call.1} parent=11 // pred_check
          %p124 = pneg %p62
        $region14: #{tpu_custom_call.1} parent=11 // pred_check_branch
          %126 = sbr.rel (%p124) target = $region16
        $region15: #{tpu_custom_call.1} parent=11 // pred_region
          _
        $region16: #{tpu_custom_call.1} parent=11 // pred_fallthru
          _
        // Predicated region
        $region17: #{tpu_custom_call.1} parent=11 // pred_check
          %p127 = pneg %p83
        $region18: #{tpu_custom_call.1} parent=11 // pred_check_branch
          %129 = sbr.rel (%p127) target = $region20
        $region19: #{tpu_custom_call.1} parent=11 // pred_region
          _
        $region20: #{tpu_custom_call.1} parent=11 // pred_fallthru
          _
      $region12: #{tpu_custom_call.1} parent=5 // pred_fallthru
        _
      %p130 = scmp.lt.s32.totalorder %s15, 2
      // Predicated region
      $region21: #{tpu_custom_call.1} parent=5 // pred_check
        %p131 = pneg %p130
      $region22: #{tpu_custom_call.1} parent=5 // pred_check_branch
        %133 = sbr.rel (%p131) target = $region24
      $region23: #{tpu_custom_call.1} parent=5 // pred_region
        // Predicated region
        $region25: #{tpu_custom_call.1} parent=23 // pred_check
          %p134 = pneg %p35
        $region26: #{tpu_custom_call.1} parent=23 // pred_check_branch
          %136 = sbr.rel (%p134) target = $region28
        $region27: #{tpu_custom_call.1} parent=23 // pred_region
          %s137 = sand.u32 %s25, 1
          %s138 = scalar_lea.sflag [#allocation3], %s137
          %s139 = sand.u32 %s25, 1
          %s140 = smul.addr %s139, 64
          %s141 = scalar_lea.vmem [#allocation2], %s140
          %143 = vsyncadd %s138, 0
          %s144 = smul.addr %s15, 8
          %s145 = smul.addr %s144, 8
          %s146 = scalar_lea.hbm %s0, %s145
          %s147 = sshll.u32 %s146, 4
          %s148 = int_to_ptr.hbm [resolvable:$true] %s147
          %s149 = sshll.u32 %s141, 4
          %s150 = int_to_ptr.vmem [resolvable:$true] %s149
          %155 = dma.hbm_to_vmem [thread:$0]  %s148, 1024, %s150, %s138, 256, 256, 16
        $region28: #{tpu_custom_call.1} parent=23 // pred_fallthru
          _
      $region24: #{tpu_custom_call.1} parent=5 // pred_fallthru
        _
      %p156 = scmp.le.s32.totalorder 1, %s15
      %p157 = scmp.lt.s32.totalorder %s15, 3
      %p158 = pnand %p156, %p157
      %p159 = pneg %p158
      // Predicated region
      $region29: #{tpu_custom_call.1} parent=5 // pred_check
        _
      $region30: #{tpu_custom_call.1} parent=5 // pred_check_branch
        %161 = sbr.rel (%p158) target = $region32
      $region31: #{tpu_custom_call.1} parent=5 // pred_region
        %s162 = ssub.s32 %s15, 1
        %s163 = sand.u32 %s28, 1
        %s164 = scalar_lea.sflag [#allocation3], %s163
        %s165 = sand.u32 %s28, 1
        %s166 = smul.addr %s165, 64
        %s167 = scalar_lea.vmem [#allocation2], %s166
        // Predicated region
        $region33: #{tpu_custom_call.1} parent=31 // pred_check
          %p168 = pneg %p41
        $region34: #{tpu_custom_call.1} parent=31 // pred_check_branch
          %170 = sbr.rel (%p168) target = $region36
        $region35: #{tpu_custom_call.1} parent=31 // pred_region
          %172 = dma.done %s164, 1024
        $region36: #{tpu_custom_call.1} parent=31 // pred_fallthru
          _
        %s173 = sand.u32 %s28, 1
        %s174 = scalar_lea.sflag [#allocation3], %s173
        %s175 = sand.u32 %s28, 1
        %s176 = smul.addr %s175, 64
        %s177 = scalar_lea.vmem [#allocation2], %s176
        %p178 = pneg %p41
        %p179 = pneg %p38
        %p180 = pneg %p62
        %p181 = pneg %p59
        %p182 = pneg %p83
        %p183 = pneg %p80
        %p184 = pneg %p109
        %p185 = pneg %p106
        %s186 = sand.u32 %s96, 1
        %s187 = scalar_lea.sflag [#allocation4], %s186
        %s188 = sand.u32 %s96, 1
        %s189 = smul.addr %s188, 64
        %s190 = scalar_lea.vmem [#allocation5], %s189
        %v191 = vld [vmem:[%s167] sm:$0xff]
        %v192 = vld [vmem:[%s167 + $0x8] sm:$0xff]
        %v193 = vld [vmem:[%s167 + $0x10] sm:$0xff]
        %v194 = vld [vmem:[%s167 + $0x18] sm:$0xff]
        %v195 = vld [vmem:[%s167 + $0x20] sm:$0xff]
        %v196 = vld [vmem:[%s167 + $0x28] sm:$0xff]
        %v197 = vld [vmem:[%s167 + $0x30] sm:$0xff]
        %v198 = vld [vmem:[%s167 + $0x38] sm:$0xff]
        %v199 = vmax.f32 %v191, %v192
        %200 = vmax.xlane.f32.xlu0 %v199
        %v201 = vpop.xlane.xlu0 %200
        %v202 = vmax.f32 %v193, %v194
        %203 = vmax.xlane.f32.xlu0 %v202
        %v204 = vpop.xlane.xlu0 %203
        %v205 = vmax.f32 %v195, %v196
        %206 = vmax.xlane.f32.xlu0 %v205
        %v207 = vpop.xlane.xlu0 %206
        %v208 = vmax.f32 %v197, %v198
        %209 = vmax.xlane.f32.xlu0 %v208
        %v210 = vpop.xlane.xlu0 %209
        %v211 = vld [vmem:[%s1] sm:$0xff]
        %v212 = vld [vmem:[%s1 + $0x8] sm:$0xff]
        %v213 = vld [vmem:[%s1 + $0x10] sm:$0xff]
        %v214 = vld [vmem:[%s1 + $0x18] sm:$0xff]
        %v215 = vld [vmem:[%s2] sm:$0xff]
        %v216 = vld [vmem:[%s2 + $0x8] sm:$0xff]
        %v217 = vld [vmem:[%s2 + $0x10] sm:$0xff]
        %v218 = vld [vmem:[%s2 + $0x18] sm:$0xff]
        %v219 = vmul.f32 %v211, %v201
        %v220 = vmul.f32 %v212, %v204
        %v221 = vmul.f32 %v213, %v207
        %v222 = vmul.f32 %v214, %v210
        %vm223 = vcmask 15360
        %v224 = vsel %vm223, %v219, 0.0
        %v225 = vsel %vm223, %v220, 0.0
        %v226 = vadd.f32 %v224, %v225
        %v227 = vsel %vm223, %v221, 0.0
        %v228 = vadd.f32 %v226, %v227
        %v229 = vsel %vm223, %v222, 0.0
        %v230 = vadd.f32 %v228, %v229
        %v231 = vrot.slane %v230, 4
        %v232 = vadd.f32 %v230, %v231
        %v233 = vrot.slane %v232, 2
        %v234 = vadd.f32 %v232, %v233
        %v235 = vrot.slane %v234, 1
        %v236 = vadd.f32 %v234, %v235
        %v237 = vmax.f32 %v236, 0.0
        %v238 = vmul.f32 %v215, %v237
        %v239 = vmul.f32 %v216, %v237
        %v240 = vmul.f32 %v217, %v237
        %v241 = vmul.f32 %v218, %v237
        %v242 = vsel %vm223, %v238, 0.0
        %243 = vadd.xlane.f32.xlu0 %v242
        %v244 = vpop.xlane.xlu0 %243
        %v245 = vsel %vm223, %v239, 0.0
        %246 = vadd.xlane.f32.xlu0 %v245
        %v247 = vpop.xlane.xlu0 %246
        %v248 = vsel %vm223, %v240, 0.0
        %249 = vadd.xlane.f32.xlu0 %v248
        %v250 = vpop.xlane.xlu0 %249
        %v251 = vsel %vm223, %v241, 0.0
        %252 = vadd.xlane.f32.xlu0 %v251
        %v253 = vpop.xlane.xlu0 %252
        %v254 = vxor.u32 %v244, 2147483648
        %v255 = vxor.u32 %v247, 2147483648
        %v256 = vxor.u32 %v250, 2147483648
        %v257 = vxor.u32 %v253, 2147483648
        %v258 = vmul.f32 %v254, 1.442695
        %v259 = vpow.pop %v258
        %v260 = vmul.f32 %v255, 1.442695
        %v261 = vpow.pop %v260
        %v262 = vmul.f32 %v256, 1.442695
        %v263 = vpow.pop %v262
        %v264 = vmul.f32 %v257, 1.442695
        %v265 = vpow.pop %v264
        %v266 = vadd.f32 %v259, 1.0
        %v267 = vadd.f32 %v261, 1.0
        %v268 = vadd.f32 %v263, 1.0
        %v269 = vadd.f32 %v265, 1.0
        %v270 = vrcp.pop %v266
        %v271 = vmul.f32 %v266, %v270
        %v272 = vsub.f32 1.0, %v271
        %v273 = vmul.f32 %v270, %v272
        %v274 = vadd.f32 %v270, %v273
        %vm275 = vweird.f32 %v266
        %vm276 = vweird.f32 %v270
        %vm277 = vmor %vm275, %vm276
        %v278 = vsel %vm277, %v270, %v274
        %v279 = vand.u32 2147483647, %v266
        %vm280 = vcmp.eq.f32.partialorder %v279, 8.507059e+37
        %v281 = vand.u32 %v266, 2147483648
        %v282 = vor.u32 1.1754944e-38, %v281
        %v283 = vsel %vm280, %v282, %v278
        %v284 = vmul.f32 1.0, %v283
        %v285 = vrcp.pop %v267
        %v286 = vmul.f32 %v267, %v285
        %v287 = vsub.f32 1.0, %v286
        %v288 = vmul.f32 %v285, %v287
        %v289 = vadd.f32 %v285, %v288
        %vm290 = vweird.f32 %v267
        %vm291 = vweird.f32 %v285
        %vm292 = vmor %vm290, %vm291
        %v293 = vsel %vm292, %v285, %v289
        %v294 = vand.u32 2147483647, %v267
        %vm295 = vcmp.eq.f32.partialorder %v294, 8.507059e+37
        %v296 = vand.u32 %v267, 2147483648
        %v297 = vor.u32 1.1754944e-38, %v296
        %v298 = vsel %vm295, %v297, %v293
        %v299 = vmul.f32 1.0, %v298
        %v300 = vrcp.pop %v268
        %v301 = vmul.f32 %v268, %v300
        %v302 = vsub.f32 1.0, %v301
        %v303 = vmul.f32 %v300, %v302
        %v304 = vadd.f32 %v300, %v303
        %vm305 = vweird.f32 %v268
        %vm306 = vweird.f32 %v300
        %vm307 = vmor %vm305, %vm306
        %v308 = vsel %vm307, %v300, %v304
        %v309 = vand.u32 2147483647, %v268
        %vm310 = vcmp.eq.f32.partialorder %v309, 8.507059e+37
        %v311 = vand.u32 %v268, 2147483648
        %v312 = vor.u32 1.1754944e-38, %v311
        %v313 = vsel %vm310, %v312, %v308
        %v314 = vmul.f32 1.0, %v313
        %v315 = vrcp.pop %v269
        %v316 = vmul.f32 %v269, %v315
        %v317 = vsub.f32 1.0, %v316
        %v318 = vmul.f32 %v315, %v317
        %v319 = vadd.f32 %v315, %v318
        %vm320 = vweird.f32 %v269
        %vm321 = vweird.f32 %v315
        %vm322 = vmor %vm320, %vm321
        %v323 = vsel %vm322, %v315, %v319
        %v324 = vand.u32 2147483647, %v269
        %vm325 = vcmp.eq.f32.partialorder %v324, 8.507059e+37
        %v326 = vand.u32 %v269, 2147483648
        %v327 = vor.u32 1.1754944e-38, %v326
        %v328 = vsel %vm325, %v327, %v323
        %v329 = vmul.f32 1.0, %v328
        %v330 = vmul.f32 %v191, %v284
        %v331 = vmul.f32 %v192, %v284
        %v332 = vmul.f32 %v193, %v299
        %v333 = vmul.f32 %v194, %v299
        %v334 = vmul.f32 %v195, %v314
        %v335 = vmul.f32 %v196, %v314
        %v336 = vmul.f32 %v197, %v329
        %v337 = vmul.f32 %v198, %v329
        %338 = vst [vmem:[%s190] sm:$0xff] %v330
        %339 = vst [vmem:[%s190 + $0x8] sm:$0xff] %v331
        %340 = vst [vmem:[%s190 + $0x10] sm:$0xff] %v332
        %341 = vst [vmem:[%s190 + $0x18] sm:$0xff] %v333
        %342 = vst [vmem:[%s190 + $0x20] sm:$0xff] %v334
        %343 = vst [vmem:[%s190 + $0x28] sm:$0xff] %v335
        %344 = vst [vmem:[%s190 + $0x30] sm:$0xff] %v336
        %345 = vst [vmem:[%s190 + $0x38] sm:$0xff] %v337
        %s346 = sand.u32 %s96, 1
        %s347 = scalar_lea.sflag [#allocation4], %s346
        %s348 = sand.u32 %s96, 1
        %s349 = smul.addr %s348, 64
        %s350 = scalar_lea.vmem [#allocation5], %s349
        // Predicated region
        $region37: #{tpu_custom_call.1} parent=31 // pred_check
          %p351 = pneg %p106
        $region38: #{tpu_custom_call.1} parent=31 // pred_check_branch
          %353 = sbr.rel (%p351) target = $region40
        $region39: #{tpu_custom_call.1} parent=31 // pred_region
          %355 = vsyncadd %s347, 0
          %s356 = smul.addr %s20, 8
          %s357 = smul.addr %s356, 8
          %s358 = scalar_lea.hbm %s3, %s357
          %s359 = sshll.u32 %s350, 4
          %s360 = int_to_ptr.vmem [resolvable:$true] %s359
          %s361 = sshll.u32 %s358, 4
          %s362 = int_to_ptr.hbm [resolvable:$true] %s361
          %367 = dma.vmem_to_hbm [thread:$0]  %s360, 1024, %s362, %s347, 256, 256, 16
        $region40: #{tpu_custom_call.1} parent=31 // pred_fallthru
          _
      $region32: #{tpu_custom_call.1} parent=5 // pred_fallthru
        _
      %p368 = scmp.le.s32.totalorder 2, %s15
      // Predicated region
      $region41: #{tpu_custom_call.1} parent=5 // pred_check
        %p369 = pneg %p368
      $region42: #{tpu_custom_call.1} parent=5 // pred_check_branch
        %371 = sbr.rel (%p369) target = $region44
      $region43: #{tpu_custom_call.1} parent=5 // pred_region
        %s372 = ssub.s32 %s15, 2
        // Predicated region
        $region45: #{tpu_custom_call.1} parent=43 // pred_check
          %p373 = pneg %p112
        $region46: #{tpu_custom_call.1} parent=43 // pred_check_branch
          %375 = sbr.rel (%p373) target = $region48
        $region47: #{tpu_custom_call.1} parent=43 // pred_region
          %s376 = sand.u32 %s97, 1
          %s377 = scalar_lea.sflag [#allocation4], %s376
          %s378 = sand.u32 %s97, 1
          %s379 = smul.addr %s378, 64
          %s380 = scalar_lea.vmem [#allocation5], %s379
          %382 = dma.done %s377, 1024
        $region48: #{tpu_custom_call.1} parent=43 // pred_fallthru
          _
      $region44: #{tpu_custom_call.1} parent=5 // pred_fallthru
        _
    $region6: #{tpu_custom_call.1} parent=1 // loop_footer
      %s19 = sadd.s32 1, %s15
    $region7: #{tpu_custom_call.1} parent=1 // loop_footer_branch
      %14 = sbr.rel target = $region3
    $region8: #{tpu_custom_call.1} parent=1 // loop_exit
      _
    %383 = vsyncpa [#allocation3], 1
    %s384 = scalar_lea.sflag [#allocation3], 1
    %385 = vsyncpa %s384, 1
    %386 = vsyncpa [#allocation4], 1
    %s387 = scalar_lea.sflag [#allocation4], 1
    %388 = vsyncpa %s387, 1

</llo_original>
